<compile_context>
chip_gen: v7x
topology: tpu7x:2x2x1
jax: 0.10.0
libtpu: 0.0.40
codegen_flags: <defaults>
</compile_context>

<pallas_src>
import functools

import jax
import jax.numpy as jnp
from jax.experimental import pallas as pl
from jax.experimental.pallas import tpu as pltpu


def _object_orient_kernel(x_ref, w_ref, b_ref, expand_ref, seg_ref, o_ref, *,
                          num_sets, num_classes):
    """Fused linear + per-set softmax on one batch tile.

    x_ref:      (TB, D)      flattened input tile (native dtype)
    w_ref:      (D, S*C)     pre-transposed fc weight (VMEM resident)
    b_ref:      (1, S*C)     fc bias, f32 (VMEM resident)
    expand_ref: (S, S*C)     0/1 matrix, expand[s, j] = (j // C == s)
    seg_ref:    (S*C, S*C)   0/1 block-diagonal, seg[i, j] = (i//C == j//C)
    o_ref:      (TB, S*C)    softmax probabilities (single lane-dense store)
    """
    C = num_classes

    # One fused MXU matmul per batch tile, f32 accumulation.
    logits = jnp.dot(x_ref[...], w_ref[...], preferred_element_type=jnp.float32)
    logits = logits + b_ref[...]

    # Per-set max for numerical stability: S tiny (TB, 1) reductions, gathered
    # into a (TB, S) stat, then broadcast back to (TB, S*C) with one *exact*
    # 0/1 matmul on the otherwise-idle MXU (no wide lane concatenate).
    maxes = [jnp.max(logits[:, s * C:(s + 1) * C], axis=-1, keepdims=True)
             for s in range(num_sets)]
    m_sets = maxes[0] if num_sets == 1 else jnp.concatenate(maxes, axis=-1)
    m_full = jnp.dot(m_sets, expand_ref[...], preferred_element_type=jnp.float32)

    e = jnp.exp(logits - m_full)
    # Per-set sums broadcast to every lane via the block-diagonal ones matmul.
    denom = jnp.dot(e, seg_ref[...], preferred_element_type=jnp.float32)

    # Exact divide (NOT approx reciprocal) so each row sums to 1 within f32
    # rounding; the kernel is DMA-bound so this costs nothing.
    o_ref[...] = (e / denom).astype(o_ref.dtype)


def object_orient_prepare(weight, bias, *, num_classes, num_sets,
                          compute_dtype=None):
    """One-time parameter prep (hoisted out of the per-forward path).

    weight: (num_classes*num_sets, input_dim)  -- PyTorch nn.Linear layout
    bias:   (num_classes*num_sets,)
    compute_dtype: optional dtype for the resident weight (e.g. bf16 when the
                   activations arrive in bf16 end-to-end).
    """
    SC = num_classes * num_sets
    assert weight.shape[0] == SC, weight.shape
    assert bias.shape == (SC,), bias.shape

    w_t = jnp.transpose(weight)                       # (D, S*C), done ONCE
    if compute_dtype is not None:
        w_t = w_t.astype(compute_dtype)
    b2d = bias.reshape(1, SC).astype(jnp.float32)

    seg_id = jnp.arange(SC, dtype=jnp.int32) // num_classes          # (SC,)
    expand = (seg_id[None, :] ==
              jnp.arange(num_sets, dtype=jnp.int32)[:, None]).astype(jnp.float32)
    seg = (seg_id[None, :] == seg_id[:, None]).astype(jnp.float32)

    return {"w_t": w_t, "b": b2d, "expand": expand, "seg": seg,
            "num_classes": num_classes, "num_sets": num_sets}


def _pick_batch_tile(B, D, SC, x_itemsize, w_itemsize, num_sets,
                     vmem_budget_bytes):
    """Derive the batch tile from a VMEM byte budget (works on v5e/v6e/v7x)."""
    # Sub-32-bit dtypes pack along sublanes: 16 rows/group for bf16, 32 for i8.
    row_align = {1: 32, 2: 16}.get(x_itemsize, 8)

    resident = (D * SC * w_itemsize          # W^T (single-buffered, resident)
                + SC * 4                     # bias
                + num_sets * SC * 4          # expand matrix
                + SC * SC * 4)               # block-diagonal matrix
    per_row = 2 * D * x_itemsize + 2 * SC * 4   # double-buffered x + out rows

    tb = (vmem_budget_bytes - resident) // per_row
    # TODO(synk): for very large input_dim the resident weight alone can blow
    # the VMEM budget; that case needs a K grid axis ("arbitrary", last) with a
    # (tb, S*C) f32 accumulator and the softmax epilogue under pl.when(k==last).
    # Not needed for input_dim ~ 1K.

    # Keep a single x-tile DMA at <= ~12 MiB (several us of DMA on every gen).
    tb = min(tb, max(row_align, (12 << 20) // (D * x_itemsize)))

    if B > row_align:
        # Guarantee >= 2 grid steps so "parallel" can shard across v7x's 2 TCs.
        half = -(-((B + 1) // 2) // row_align) * row_align
        tb = min(tb, half)

    tb = max(row_align, (tb // row_align) * row_align)
    if tb >= B:
        tb = B        # single full-extent block (legal for any B)
    return tb


def object_orient_forward(params, x, *, vmem_budget_bytes=40 << 20,
                          vmem_limit_bytes=48 << 20):
    """JAX wrapper mirroring ObjectOrientLayer.forward.

    x: (B, ...) -- flattened to (B, input_dim), read by the kernel in its
       native dtype (no wrapper-side cast pass over x).
    returns: (B, num_sets, num_classes) float32 probabilities
    """
    S, C = params["num_sets"], params["num_classes"]
    SC = S * C
    w_t, b, expand, seg = params["w_t"], params["b"], params["expand"], params["seg"]

    B = x.shape[0]
    x_flat = x.reshape(B, -1)               # == torch.flatten(x, start_dim=1)
    D = x_flat.shape[1]
    assert w_t.shape == (D, SC), (w_t.shape, D, SC)

    if w_t.dtype != x_flat.dtype:
        # Cast the tiny resident weight to x's dtype, never x itself
        # (x traffic dominates HBM bytes).
        w_t = w_t.astype(x_flat.dtype)

    x_item = jnp.dtype(x_flat.dtype).itemsize
    w_item = jnp.dtype(w_t.dtype).itemsize
    tb = _pick_batch_tile(B, D, SC, x_item, w_item, S, vmem_budget_bytes)
    grid = (pl.cdiv(B, tb),)

    kernel = functools.partial(_object_orient_kernel, num_sets=S, num_classes=C)
    cost = pl.CostEstimate(
        flops=2 * B * D * SC + 2 * B * SC * SC + 2 * B * S * SC,
        transcendentals=B * SC,
        bytes_accessed=B * D * x_item + D * SC * w_item + B * SC * 4,
    )

    out2d = pl.pallas_call(
        kernel,
        out_shape=jax.ShapeDtypeStruct((B, SC), jnp.float32),
        grid_spec=pltpu.PrefetchScalarGridSpec(
            num_scalar_prefetch=0,
            grid=grid,
            in_specs=[
                # batch-tiled x: auto double-buffered by the Pallas pipeline
                pl.BlockSpec((tb, D), lambda i: (i, 0)),
                # VMEM-resident operands (constant index_map -> single buffer)
                pl.BlockSpec((D, SC), lambda i: (0, 0),
                             pipeline_mode=pl.Buffered(1)),
                pl.BlockSpec((1, SC), lambda i: (0, 0),
                             pipeline_mode=pl.Buffered(1)),
                pl.BlockSpec((S, SC), lambda i: (0, 0),
                             pipeline_mode=pl.Buffered(1)),
                pl.BlockSpec((SC, SC), lambda i: (0, 0),
                             pipeline_mode=pl.Buffered(1)),
            ],
            out_specs=pl.BlockSpec((tb, SC), lambda i: (i, 0)),
        ),
        compiler_params=pltpu.CompilerParams(
            dimension_semantics=("parallel",),      # v7x: shard steps over 2 TCs
            vmem_limit_bytes=vmem_limit_bytes,      # above 16/32 MiB defaults
        ),
        cost_estimate=cost,
    )(x_flat, w_t, b, expand, seg)

    return out2d.reshape(B, S, C)


if __name__ == "__main__":
    # Shapes consistent with the module: NCHW input (2, 4, 16, 16)
    # -> input_dim = 4*16*16 = 1024, num_classes = 16, num_sets = 4.
    B, C_in, H, W = 2, 4, 16, 16
    num_classes, num_sets = 16, 4
    input_dim = C_in * H * W
    SC = num_classes * num_sets

    key = jax.random.PRNGKey(0)
    kx, kw, kb = jax.random.split(key, 3)
    x = jax.random.normal(kx, (B, C_in, H, W), dtype=jnp.float32)
    # nn.Linear default init: U(-1/sqrt(fan_in), 1/sqrt(fan_in)).
    bound = 1.0 / (input_dim ** 0.5)
    weight = jax.random.uniform(kw, (SC, input_dim), minval=-bound,
                                maxval=bound, dtype=jnp.float32)
    bias = jax.random.uniform(kb, (SC,), minval=-bound, maxval=bound,
                              dtype=jnp.float32)

    # One-time parameter prep (transpose / cast / constants hoisted).
    params = object_orient_prepare(weight, bias, num_classes=num_classes,
                                   num_sets=num_sets)

    # --- Check 1: f32, tiny batch (single full-extent block). ---
    out = jax.block_until_ready(object_orient_forward(params, x))
    ref_logits = jnp.dot(x.reshape(B, -1), weight.T,
                         precision=jax.lax.Precision.HIGHEST) + bias
    ref = jax.nn.softmax(ref_logits.reshape(B, num_sets, num_classes), axis=-1)
    assert out.shape == (B, num_sets, num_classes)
    assert jnp.allclose(out, ref, atol=1e-3, rtol=1e-3), \
        float(jnp.max(jnp.abs(out - ref)))
    assert jnp.allclose(jnp.sum(out, axis=-1), 1.0, atol=1e-3)

    # --- Check 2: f32, larger batch -> >=2 grid steps + ragged last tile. ---
    B2 = 200
    x2 = jax.random.normal(jax.random.PRNGKey(1), (B2, C_in, H, W),
                           dtype=jnp.float32)
    out2 = jax.block_until_ready(object_orient_forward(params, x2))
    ref2_logits = jnp.dot(x2.reshape(B2, -1), weight.T,
                          precision=jax.lax.Precision.HIGHEST) + bias
    ref2 = jax.nn.softmax(ref2_logits.reshape(B2, num_sets, num_classes), axis=-1)
    assert out2.shape == (B2, num_sets, num_classes)
    assert jnp.allclose(out2, ref2, atol=1e-3, rtol=1e-3), \
        float(jnp.max(jnp.abs(out2 - ref2)))
    assert jnp.allclose(jnp.sum(out2, axis=-1), 1.0, atol=1e-3)

    # --- Check 3: bf16 end-to-end (x already bf16 from the producer; weight
    #     prepared once in bf16). Exercises 16-row tile alignment. ---
    params_bf16 = object_orient_prepare(weight, bias, num_classes=num_classes,
                                        num_sets=num_sets,
                                        compute_dtype=jnp.bfloat16)
    x3 = x2.astype(jnp.bfloat16)
    out3 = jax.block_until_ready(object_orient_forward(params_bf16, x3))
    x3f = x3.astype(jnp.float32).reshape(B2, -1)
    w3f = weight.astype(jnp.bfloat16).astype(jnp.float32)
    ref3_logits = jnp.dot(x3f, w3f.T,
                          precision=jax.lax.Precision.HIGHEST) + bias
    ref3 = jax.nn.softmax(ref3_logits.reshape(B2, num_sets, num_classes), axis=-1)
    assert out3.shape == (B2, num_sets, num_classes)
    assert jnp.allclose(out3, ref3, atol=3e-3, rtol=3e-3), \
        float(jnp.max(jnp.abs(out3 - ref3)))
    assert jnp.allclose(jnp.sum(out3, axis=-1), 1.0, atol=3e-3)

    print("KERNEL_OK")
</pallas_src>

<mosaic_0001>
module attributes {stable_mosaic.version = 11 : i64} {
  func.func @_object_orient_kernel(%arg0: i32, %arg1: memref<2x1024xf32, #tpu.memory_space<vmem>>, %arg2: memref<1024x64xf32, #tpu.memory_space<vmem>>, %arg3: memref<1x64xf32, #tpu.memory_space<vmem>>, %arg4: memref<4x64xf32, #tpu.memory_space<vmem>>, %arg5: memref<64x64xf32, #tpu.memory_space<vmem>>, %arg6: memref<2x64xf32, #tpu.memory_space<vmem>>) attributes {dimension_semantics = [#tpu.dimension_semantics<parallel>], iteration_bounds = array<i64: 1>, scalar_prefetch = 0 : i64, scratch_operands = 0 : i64, tpu.core_type = #tpu.core_type<tc>, window_params = [{transform_indices = @transform_0, window_bounds = array<i64: 2, 1024>}, {pipeline_mode = #tpu.pipeline_mode<synchronous>, transform_indices = @transform_1, window_bounds = array<i64: 1024, 64>}, {pipeline_mode = #tpu.pipeline_mode<synchronous>, transform_indices = @transform_2, window_bounds = array<i64: 1, 64>}, {pipeline_mode = #tpu.pipeline_mode<synchronous>, transform_indices = @transform_3, window_bounds = array<i64: 4, 64>}, {pipeline_mode = #tpu.pipeline_mode<synchronous>, transform_indices = @transform_4, window_bounds = array<i64: 64, 64>}, {transform_indices = @transform_5, window_bounds = array<i64: 2, 64>}]} {
    %c0 = arith.constant 0 : index
    %c0_0 = arith.constant 0 : index
    %0 = vector.load %arg1[%c0, %c0_0] : memref<2x1024xf32, #tpu.memory_space<vmem>>, vector<2x1024xf32>
    %c0_1 = arith.constant 0 : index
    %c0_2 = arith.constant 0 : index
    %1 = vector.load %arg2[%c0_1, %c0_2] : memref<1024x64xf32, #tpu.memory_space<vmem>>, vector<1024x64xf32>
    %cst = arith.constant dense<0.000000e+00> : vector<2x64xf32>
    %2 = tpu.matmul %0, %1, %cst {dimension_numbers = #tpu.dot_dimension_numbers<[1], [0], [0], [1], [0, 0, 1, 1], [], []>} : vector<2x1024xf32>, vector<1024x64xf32>, vector<2x64xf32> -> vector<2x64xf32>
    %c0_3 = arith.constant 0 : index
    %c0_4 = arith.constant 0 : index
    %3 = vector.load %arg3[%c0_3, %c0_4] : memref<1x64xf32, #tpu.memory_space<vmem>>, vector<1x64xf32>
    %4 = vector.broadcast %3 : vector<1x64xf32> to vector<2x64xf32>
    %5 = arith.addf %2, %4 : vector<2x64xf32>
    %6 = vector.extract_strided_slice %5 {offsets = [0, 0], sizes = [2, 16], strides = [1, 1]} : vector<2x64xf32> to vector<2x16xf32>
    %cst_5 = arith.constant dense<0xFF800000> : vector<2xf32>
    %7 = vector.multi_reduction <maximumf>, %6, %cst_5 [1] : vector<2x16xf32> to vector<2xf32>
    %8 = vector.shape_cast %7 : vector<2xf32> to vector<2x1xf32>
    %9 = vector.extract_strided_slice %5 {offsets = [0, 16], sizes = [2, 16], strides = [1, 1]} : vector<2x64xf32> to vector<2x16xf32>
    %cst_6 = arith.constant dense<0xFF800000> : vector<2xf32>
    %10 = vector.multi_reduction <maximumf>, %9, %cst_6 [1] : vector<2x16xf32> to vector<2xf32>
    %11 = vector.shape_cast %10 : vector<2xf32> to vector<2x1xf32>
    %12 = vector.extract_strided_slice %5 {offsets = [0, 32], sizes = [2, 16], strides = [1, 1]} : vector<2x64xf32> to vector<2x16xf32>
    %cst_7 = arith.constant dense<0xFF800000> : vector<2xf32>
    %13 = vector.multi_reduction <maximumf>, %12, %cst_7 [1] : vector<2x16xf32> to vector<2xf32>
    %14 = vector.shape_cast %13 : vector<2xf32> to vector<2x1xf32>
    %15 = vector.extract_strided_slice %5 {offsets = [0, 48], sizes = [2, 16], strides = [1, 1]} : vector<2x64xf32> to vector<2x16xf32>
    %cst_8 = arith.constant dense<0xFF800000> : vector<2xf32>
    %16 = vector.multi_reduction <maximumf>, %15, %cst_8 [1] : vector<2x16xf32> to vector<2xf32>
    %17 = vector.shape_cast %16 : vector<2xf32> to vector<2x1xf32>
    %18 = tpu.concatenate %8, %11, %14, %17 in 1 : vector<2x1xf32>, vector<2x1xf32>, vector<2x1xf32>, vector<2x1xf32> -> vector<2x4xf32>
    %c0_9 = arith.constant 0 : index
    %c0_10 = arith.constant 0 : index
    %19 = vector.load %arg4[%c0_9, %c0_10] : memref<4x64xf32, #tpu.memory_space<vmem>>, vector<4x64xf32>
    %cst_11 = arith.constant dense<0.000000e+00> : vector<2x64xf32>
    %20 = tpu.matmul %18, %19, %cst_11 {dimension_numbers = #tpu.dot_dimension_numbers<[1], [0], [0], [1], [0, 0, 1, 1], [], []>} : vector<2x4xf32>, vector<4x64xf32>, vector<2x64xf32> -> vector<2x64xf32>
    %21 = arith.subf %5, %20 : vector<2x64xf32>
    %22 = math.exp %21 : vector<2x64xf32>
    %c0_12 = arith.constant 0 : index
    %c0_13 = arith.constant 0 : index
    %23 = vector.load %arg5[%c0_12, %c0_13] : memref<64x64xf32, #tpu.memory_space<vmem>>, vector<64x64xf32>
    %cst_14 = arith.constant dense<0.000000e+00> : vector<2x64xf32>
    %24 = tpu.matmul %22, %23, %cst_14 {dimension_numbers = #tpu.dot_dimension_numbers<[1], [0], [0], [1], [0, 0, 1, 1], [], []>} : vector<2x64xf32>, vector<64x64xf32>, vector<2x64xf32> -> vector<2x64xf32>
    %25 = arith.divf %22, %24 : vector<2x64xf32>
    %c0_15 = arith.constant 0 : index
    %c0_16 = arith.constant 0 : index
    %26 = vector.load %arg6[%c0_15, %c0_16] : memref<2x64xf32, #tpu.memory_space<vmem>>, vector<2x64xf32>
    tpu.vector_store %arg6[%c0_15, %c0_16], %25 {strides = array<i32>} : memref<2x64xf32, #tpu.memory_space<vmem>>, vector<2x64xf32>,
    return
  }
  func.func @transform_0(%arg0: i32) -> (i32, i32) {
    %c0_i32 = arith.constant 0 : i32
    %c0_i32_0 = arith.constant 0 : i32
    return %arg0, %c0_i32 : i32, i32
  }
  func.func @transform_1(%arg0: i32) -> (i32, i32) {
    %c0_i32 = arith.constant 0 : i32
    %c0_i32_0 = arith.constant 0 : i32
    %c0_i32_1 = arith.constant 0 : i32
    return %c0_i32, %c0_i32_0 : i32, i32
  }
  func.func @transform_2(%arg0: i32) -> (i32, i32) {
    %c0_i32 = arith.constant 0 : i32
    %c0_i32_0 = arith.constant 0 : i32
    %c0_i32_1 = arith.constant 0 : i32
    return %c0_i32, %c0_i32_0 : i32, i32
  }
  func.func @transform_3(%arg0: i32) -> (i32, i32) {
    %c0_i32 = arith.constant 0 : i32
    %c0_i32_0 = arith.constant 0 : i32
    %c0_i32_1 = arith.constant 0 : i32
    return %c0_i32, %c0_i32_0 : i32, i32
  }
  func.func @transform_4(%arg0: i32) -> (i32, i32) {
    %c0_i32 = arith.constant 0 : i32
    %c0_i32_0 = arith.constant 0 : i32
    %c0_i32_1 = arith.constant 0 : i32
    return %c0_i32, %c0_i32_0 : i32, i32
  }
  func.func @transform_5(%arg0: i32) -> (i32, i32) {
    %c0_i32 = arith.constant 0 : i32
    %c0_i32_0 = arith.constant 0 : i32
    return %arg0, %c0_i32 : i32, i32
  }
}

</mosaic_0001>

<llo_original>
// kernel: tpu_custom_call.1
$region0: #{tpu_custom_call.1}
  #allocation0 [shape = 'u32[]', space=smem, size = 0x4, offset = 0x4, fixed_abs, tag = 'smem constant byte address 0x4 - core index']
  #allocation1 [shape = 'u32[144,128]{1,0:T(1,128)}', space=vmem, size = 0x12000, scoped, tag = 'internal scratch']
  %s0 = inlined_call_operand.vmem [shape: f32[2,1024], index: 0, kind: input, shape index: {}]
  %s1 = inlined_call_operand.vmem [shape: f32[1024,64], index: 1, kind: input, shape index: {}]
  %s2 = inlined_call_operand.vmem [shape: f32[1,64], index: 2, kind: input, shape index: {}]
  %s3 = inlined_call_operand.vmem [shape: f32[4,64], index: 3, kind: input, shape index: {}]
  %s4 = inlined_call_operand.vmem [shape: f32[64,64], index: 4, kind: input, shape index: {}]
  %s5 = inlined_call_operand.hbm [shape: f32[2,64], index: 5, kind: output, shape index: {}]
  %s6 = sld [smem:[#allocation0]]
  $region30: #{tpu_custom_call.1} parent=0
    _
  %s8 = ssub.s32 1, %s6
  %s9 = scalar_select 0, %s8, %s6
  $region1: #{tpu_custom_call.1} parent=0
    #allocation2 [shape = 'u8[1024]{0}', space=vmem, size = 0x400, scoped, tag = 'output window, operand 0, single buffered']
    #allocation3 [shape = 's32[1]{0}', space=sflag, size = 0x4, scoped, tag = 'scoped memory for tpu_custom_call.1']
    %10 = vsyncpa [#allocation3], 0
    // Predicated region
    $region2: #{tpu_custom_call.1} parent=1 // pred_check
      _
    $region3: #{tpu_custom_call.1} parent=1 // pred_check_branch
      %12 = sbr.rel (0) target = $region5
    $region4: #{tpu_custom_call.1} parent=1 // pred_region
      _
    $region5: #{tpu_custom_call.1} parent=1 // pred_fallthru
      _
    // Predicated region
    $region6: #{tpu_custom_call.1} parent=1 // pred_check
      _
    $region7: #{tpu_custom_call.1} parent=1 // pred_check_branch
      %14 = sbr.rel (0) target = $region9
    $region8: #{tpu_custom_call.1} parent=1 // pred_region
      _
    $region9: #{tpu_custom_call.1} parent=1 // pred_fallthru
      _
    // Predicated region
    $region10: #{tpu_custom_call.1} parent=1 // pred_check
      _
    $region11: #{tpu_custom_call.1} parent=1 // pred_check_branch
      %16 = sbr.rel (0) target = $region13
    $region12: #{tpu_custom_call.1} parent=1 // pred_region
      _
    $region13: #{tpu_custom_call.1} parent=1 // pred_fallthru
      _
    // Predicated region
    $region14: #{tpu_custom_call.1} parent=1 // pred_check
      _
    $region15: #{tpu_custom_call.1} parent=1 // pred_check_branch
      %18 = sbr.rel (0) target = $region17
    $region16: #{tpu_custom_call.1} parent=1 // pred_region
      _
    $region17: #{tpu_custom_call.1} parent=1 // pred_fallthru
      _
    // Predicated region
    $region18: #{tpu_custom_call.1} parent=1 // pred_check
      _
    $region19: #{tpu_custom_call.1} parent=1 // pred_check_branch
      %20 = sbr.rel (0) target = $region21
    $region20: #{tpu_custom_call.1} parent=1 // pred_region
      _
    $region21: #{tpu_custom_call.1} parent=1 // pred_fallthru
      _
    %v21 = vld [vmem:[%s0] sm:$0xff]
    %v22 = vld [vmem:[%s0 + $0x8] sm:$0xff]
    %v23 = vld [vmem:[%s1] sm:$0xff]
    %v24 = vld [vmem:[%s1 + $0x8] sm:$0xff]
    %v25 = vld [vmem:[%s1 + $0x10] sm:$0xff]
    %v26 = vld [vmem:[%s1 + $0x18] sm:$0xff]
    %v27 = vld [vmem:[%s1 + $0x20] sm:$0xff]
    %v28 = vld [vmem:[%s1 + $0x28] sm:$0xff]
    %v29 = vld [vmem:[%s1 + $0x30] sm:$0xff]
    %v30 = vld [vmem:[%s1 + $0x38] sm:$0xff]
    %v31 = vld [vmem:[%s1 + $0x40] sm:$0xff]
    %v32 = vld [vmem:[%s1 + $0x48] sm:$0xff]
    %v33 = vld [vmem:[%s1 + $0x50] sm:$0xff]
    %v34 = vld [vmem:[%s1 + $0x58] sm:$0xff]
    %v35 = vld [vmem:[%s1 + $0x60] sm:$0xff]
    %v36 = vld [vmem:[%s1 + $0x68] sm:$0xff]
    %v37 = vld [vmem:[%s1 + $0x70] sm:$0xff]
    %v38 = vld [vmem:[%s1 + $0x78] sm:$0xff]
    %v39 = vld [vmem:[%s1 + $0x80] sm:$0xff]
    %v40 = vld [vmem:[%s1 + $0x88] sm:$0xff]
    %v41 = vld [vmem:[%s1 + $0x90] sm:$0xff]
    %v42 = vld [vmem:[%s1 + $0x98] sm:$0xff]
    %v43 = vld [vmem:[%s1 + $0xa0] sm:$0xff]
    %v44 = vld [vmem:[%s1 + $0xa8] sm:$0xff]
    %v45 = vld [vmem:[%s1 + $0xb0] sm:$0xff]
    %v46 = vld [vmem:[%s1 + $0xb8] sm:$0xff]
    %v47 = vld [vmem:[%s1 + $0xc0] sm:$0xff]
    %v48 = vld [vmem:[%s1 + $0xc8] sm:$0xff]
    %v49 = vld [vmem:[%s1 + $0xd0] sm:$0xff]
    %v50 = vld [vmem:[%s1 + $0xd8] sm:$0xff]
    %v51 = vld [vmem:[%s1 + $0xe0] sm:$0xff]
    %v52 = vld [vmem:[%s1 + $0xe8] sm:$0xff]
    %v53 = vld [vmem:[%s1 + $0xf0] sm:$0xff]
    %v54 = vld [vmem:[%s1 + $0xf8] sm:$0xff]
    %v55 = vld [vmem:[%s1 + $0x100] sm:$0xff]
    %v56 = vld [vmem:[%s1 + $0x108] sm:$0xff]
    %v57 = vld [vmem:[%s1 + $0x110] sm:$0xff]
    %v58 = vld [vmem:[%s1 + $0x118] sm:$0xff]
    %v59 = vld [vmem:[%s1 + $0x120] sm:$0xff]
    %v60 = vld [vmem:[%s1 + $0x128] sm:$0xff]
    %v61 = vld [vmem:[%s1 + $0x130] sm:$0xff]
    %v62 = vld [vmem:[%s1 + $0x138] sm:$0xff]
    %v63 = vld [vmem:[%s1 + $0x140] sm:$0xff]
    %v64 = vld [vmem:[%s1 + $0x148] sm:$0xff]
    %v65 = vld [vmem:[%s1 + $0x150] sm:$0xff]
    %v66 = vld [vmem:[%s1 + $0x158] sm:$0xff]
    %v67 = vld [vmem:[%s1 + $0x160] sm:$0xff]
    %v68 = vld [vmem:[%s1 + $0x168] sm:$0xff]
    %v69 = vld [vmem:[%s1 + $0x170] sm:$0xff]
    %v70 = vld [vmem:[%s1 + $0x178] sm:$0xff]
    %v71 = vld [vmem:[%s1 + $0x180] sm:$0xff]
    %v72 = vld [vmem:[%s1 + $0x188] sm:$0xff]
    %v73 = vld [vmem:[%s1 + $0x190] sm:$0xff]
    %v74 = vld [vmem:[%s1 + $0x198] sm:$0xff]
    %v75 = vld [vmem:[%s1 + $0x1a0] sm:$0xff]
    %v76 = vld [vmem:[%s1 + $0x1a8] sm:$0xff]
    %v77 = vld [vmem:[%s1 + $0x1b0] sm:$0xff]
    %v78 = vld [vmem:[%s1 + $0x1b8] sm:$0xff]
    %v79 = vld [vmem:[%s1 + $0x1c0] sm:$0xff]
    %v80 = vld [vmem:[%s1 + $0x1c8] sm:$0xff]
    %v81 = vld [vmem:[%s1 + $0x1d0] sm:$0xff]
    %v82 = vld [vmem:[%s1 + $0x1d8] sm:$0xff]
    %v83 = vld [vmem:[%s1 + $0x1e0] sm:$0xff]
    %v84 = vld [vmem:[%s1 + $0x1e8] sm:$0xff]
    %v85 = vld [vmem:[%s1 + $0x1f0] sm:$0xff]
    %v86 = vld [vmem:[%s1 + $0x1f8] sm:$0xff]
    %v87 = vld [vmem:[%s1 + $0x200] sm:$0xff]
    %v88 = vld [vmem:[%s1 + $0x208] sm:$0xff]
    %v89 = vld [vmem:[%s1 + $0x210] sm:$0xff]
    %v90 = vld [vmem:[%s1 + $0x218] sm:$0xff]
    %v91 = vld [vmem:[%s1 + $0x220] sm:$0xff]
    %v92 = vld [vmem:[%s1 + $0x228] sm:$0xff]
    %v93 = vld [vmem:[%s1 + $0x230] sm:$0xff]
    %v94 = vld [vmem:[%s1 + $0x238] sm:$0xff]
    %v95 = vld [vmem:[%s1 + $0x240] sm:$0xff]
    %v96 = vld [vmem:[%s1 + $0x248] sm:$0xff]
    %v97 = vld [vmem:[%s1 + $0x250] sm:$0xff]
    %v98 = vld [vmem:[%s1 + $0x258] sm:$0xff]
    %v99 = vld [vmem:[%s1 + $0x260] sm:$0xff]
    %v100 = vld [vmem:[%s1 + $0x268] sm:$0xff]
    %v101 = vld [vmem:[%s1 + $0x270] sm:$0xff]
    %v102 = vld [vmem:[%s1 + $0x278] sm:$0xff]
    %v103 = vld [vmem:[%s1 + $0x280] sm:$0xff]
    %v104 = vld [vmem:[%s1 + $0x288] sm:$0xff]
    %v105 = vld [vmem:[%s1 + $0x290] sm:$0xff]
    %v106 = vld [vmem:[%s1 + $0x298] sm:$0xff]
    %v107 = vld [vmem:[%s1 + $0x2a0] sm:$0xff]
    %v108 = vld [vmem:[%s1 + $0x2a8] sm:$0xff]
    %v109 = vld [vmem:[%s1 + $0x2b0] sm:$0xff]
    %v110 = vld [vmem:[%s1 + $0x2b8] sm:$0xff]
    %v111 = vld [vmem:[%s1 + $0x2c0] sm:$0xff]
    %v112 = vld [vmem:[%s1 + $0x2c8] sm:$0xff]
    %v113 = vld [vmem:[%s1 + $0x2d0] sm:$0xff]
    %v114 = vld [vmem:[%s1 + $0x2d8] sm:$0xff]
    %v115 = vld [vmem:[%s1 + $0x2e0] sm:$0xff]
    %v116 = vld [vmem:[%s1 + $0x2e8] sm:$0xff]
    %v117 = vld [vmem:[%s1 + $0x2f0] sm:$0xff]
    %v118 = vld [vmem:[%s1 + $0x2f8] sm:$0xff]
    %v119 = vld [vmem:[%s1 + $0x300] sm:$0xff]
    %v120 = vld [vmem:[%s1 + $0x308] sm:$0xff]
    %v121 = vld [vmem:[%s1 + $0x310] sm:$0xff]
    %v122 = vld [vmem:[%s1 + $0x318] sm:$0xff]
    %v123 = vld [vmem:[%s1 + $0x320] sm:$0xff]
    %v124 = vld [vmem:[%s1 + $0x328] sm:$0xff]
    %v125 = vld [vmem:[%s1 + $0x330] sm:$0xff]
    %v126 = vld [vmem:[%s1 + $0x338] sm:$0xff]
    %v127 = vld [vmem:[%s1 + $0x340] sm:$0xff]
    %v128 = vld [vmem:[%s1 + $0x348] sm:$0xff]
    %v129 = vld [vmem:[%s1 + $0x350] sm:$0xff]
    %v130 = vld [vmem:[%s1 + $0x358] sm:$0xff]
    %v131 = vld [vmem:[%s1 + $0x360] sm:$0xff]
    %v132 = vld [vmem:[%s1 + $0x368] sm:$0xff]
    %v133 = vld [vmem:[%s1 + $0x370] sm:$0xff]
    %v134 = vld [vmem:[%s1 + $0x378] sm:$0xff]
    %v135 = vld [vmem:[%s1 + $0x380] sm:$0xff]
    %v136 = vld [vmem:[%s1 + $0x388] sm:$0xff]
    %v137 = vld [vmem:[%s1 + $0x390] sm:$0xff]
    %v138 = vld [vmem:[%s1 + $0x398] sm:$0xff]
    %v139 = vld [vmem:[%s1 + $0x3a0] sm:$0xff]
    %v140 = vld [vmem:[%s1 + $0x3a8] sm:$0xff]
    %v141 = vld [vmem:[%s1 + $0x3b0] sm:$0xff]
    %v142 = vld [vmem:[%s1 + $0x3b8] sm:$0xff]
    %v143 = vld [vmem:[%s1 + $0x3c0] sm:$0xff]
    %v144 = vld [vmem:[%s1 + $0x3c8] sm:$0xff]
    %v145 = vld [vmem:[%s1 + $0x3d0] sm:$0xff]
    %v146 = vld [vmem:[%s1 + $0x3d8] sm:$0xff]
    %v147 = vld [vmem:[%s1 + $0x3e0] sm:$0xff]
    %v148 = vld [vmem:[%s1 + $0x3e8] sm:$0xff]
    %v149 = vld [vmem:[%s1 + $0x3f0] sm:$0xff]
    %v150 = vld [vmem:[%s1 + $0x3f8] sm:$0xff]
    %v151 = vld [vmem:[%s2] sm:$0x1]
    %v153 = vlaneseq
    %v154 = vshrl.u32 %v153, 7
    %v155 = vsub.s32 0, %v154
    %v156 = vrot.slane %v151, %v155
    %v160 = vcombine.high %v21, %v21
    %v162 = vunpack.c.l.s4 1983009808
    %v163 = vunpack.c.0.s8 %v162
    %v164 = vlaneseq
    %v165 = vshrl.u32 %v164, 7
    %v166 = vsub.s32 %v163, %v165
    %v167 = vrot.slane %v21, %v166
    %v169 = vunpack.c.l.s4 1983009808
    %v170 = vunpack.c.0.s8 %v169
    %v171 = vlaneseq
    %v172 = vshrl.u32 %v171, 7
    %v173 = vsub.s32 %v170, %v172
    %v174 = vrot.slane %v160, %v173
    %v175 = vcombine.high %v167, %v167
    %v176 = vcombine.high %v174, %v174
    %v177 = vcombine.high %v22, %v22
    %v179 = vunpack.c.l.s4 1983009808
    %v180 = vunpack.c.0.s8 %v179
    %v181 = vlaneseq
    %v182 = vshrl.u32 %v181, 7
    %v183 = vsub.s32 %v180, %v182
    %v184 = vrot.slane %v22, %v183
    %v186 = vunpack.c.l.s4 1983009808
    %v187 = vunpack.c.0.s8 %v186
    %v188 = vlaneseq
    %v189 = vshrl.u32 %v188, 7
    %v190 = vsub.s32 %v187, %v189
    %v191 = vrot.slane %v177, %v190
    %v192 = vcombine.high %v184, %v184
    %v193 = vcombine.high %v191, %v191
    %202 = vmatprep.subr.mxu0 0.0
    %203 = vmatpush1.msra.mxu0 %v23
    %204 = vmatprep.subr.mxu0 0.0
    %205 = vmatpush1.msra.mxu0 %v24
    %206 = vmatprep.subr.mxu0 0.0
    %207 = vmatpush1.msra.mxu0 %v25
    %208 = vmatprep.subr.mxu0 0.0
    %209 = vmatpush1.msra.mxu0 %v26
    %210 = vmatprep.subr.mxu0 0.0
    %211 = vmatpush1.msra.mxu0 %v27
    %212 = vmatprep.subr.mxu0 0.0
    %213 = vmatpush1.msra.mxu0 %v28
    %214 = vmatprep.subr.mxu0 0.0
    %215 = vmatpush1.msra.mxu0 %v29
    %216 = vmatprep.subr.mxu0 0.0
    %217 = vmatpush1.msra.mxu0 %v30
    %218 = vmatprep.subr.mxu0 0.0
    %219 = vmatpush1.msra.mxu0 %v31
    %220 = vmatprep.subr.mxu0 0.0
    %221 = vmatpush1.msra.mxu0 %v32
    %222 = vmatprep.subr.mxu0 0.0
    %223 = vmatpush1.msra.mxu0 %v33
    %224 = vmatprep.subr.mxu0 0.0
    %225 = vmatpush1.msra.mxu0 %v34
    %226 = vmatprep.subr.mxu0 0.0
    %227 = vmatpush1.msra.mxu0 %v35
    %228 = vmatprep.subr.mxu0 0.0
    %229 = vmatpush1.msra.mxu0 %v36
    %230 = vmatprep.subr.mxu0 0.0
    %231 = vmatpush1.msra.mxu0 %v37
    %232 = vmatprep.subr.mxu0 0.0
    %233 = vmatpush1.msra.mxu0 %v38
    %234 = vmatprep.subr.mxu0 0.0
    %235 = vmatpush1.msra.mxu0 %v39
    %236 = vmatprep.subr.mxu0 0.0
    %237 = vmatpush1.msra.mxu0 %v40
    %238 = vmatprep.subr.mxu0 0.0
    %239 = vmatpush1.msra.mxu0 %v41
    %240 = vmatprep.subr.mxu0 0.0
    %241 = vmatpush1.msra.mxu0 %v42
    %242 = vmatprep.subr.mxu0 0.0
    %243 = vmatpush1.msra.mxu0 %v43
    %244 = vmatprep.subr.mxu0 0.0
    %245 = vmatpush1.msra.mxu0 %v44
    %246 = vmatprep.subr.mxu0 0.0
    %247 = vmatpush1.msra.mxu0 %v45
    %248 = vmatprep.subr.mxu0 0.0
    %249 = vmatpush1.msra.mxu0 %v46
    %250 = vmatprep.subr.mxu0 0.0
    %251 = vmatpush1.msra.mxu0 %v47
    %252 = vmatprep.subr.mxu0 0.0
    %253 = vmatpush1.msra.mxu0 %v48
    %254 = vmatprep.subr.mxu0 0.0
    %255 = vmatpush1.msra.mxu0 %v49
    %256 = vmatprep.subr.mxu0 0.0
    %257 = vmatpush1.msra.mxu0 %v50
    %258 = vmatprep.subr.mxu0 0.0
    %259 = vmatpush1.msra.mxu0 %v51
    %260 = vmatprep.subr.mxu0 0.0
    %261 = vmatpush1.msra.mxu0 %v52
    %262 = vmatprep.subr.mxu0 0.0
    %263 = vmatpush1.msra.mxu0 %v53
    %264 = vmatprep.subr.mxu0 0.0
    %265 = vmatpush1.msra.mxu0 %v54
    %266 = vmatprep.mubr.f32.mxu0 %v175
    %267 = vmatmul.mubr.f32.gmra.mrb[0].mxu0 %v167
    %v268 = vpop.f32.mrb[0].mxu0
    %v269 = vadd.f32 %v156, %v268
    %v270 = vpop.f32.mrb[0].mxu0
    %271 = vdwg.mxu0
    %272 = vmatprep.subr.mxu0 0.0
    %273 = vmatpush1.msra.mxu0 %v55
    %274 = vmatprep.subr.mxu0 0.0
    %275 = vmatpush1.msra.mxu0 %v56
    %276 = vmatprep.subr.mxu0 0.0
    %277 = vmatpush1.msra.mxu0 %v57
    %278 = vmatprep.subr.mxu0 0.0
    %279 = vmatpush1.msra.mxu0 %v58
    %280 = vmatprep.subr.mxu0 0.0
    %281 = vmatpush1.msra.mxu0 %v59
    %282 = vmatprep.subr.mxu0 0.0
    %283 = vmatpush1.msra.mxu0 %v60
    %284 = vmatprep.subr.mxu0 0.0
    %285 = vmatpush1.msra.mxu0 %v61
    %286 = vmatprep.subr.mxu0 0.0
    %287 = vmatpush1.msra.mxu0 %v62
    %288 = vmatprep.subr.mxu0 0.0
    %289 = vmatpush1.msra.mxu0 %v63
    %290 = vmatprep.subr.mxu0 0.0
    %291 = vmatpush1.msra.mxu0 %v64
    %292 = vmatprep.subr.mxu0 0.0
    %293 = vmatpush1.msra.mxu0 %v65
    %294 = vmatprep.subr.mxu0 0.0
    %295 = vmatpush1.msra.mxu0 %v66
    %296 = vmatprep.subr.mxu0 0.0
    %297 = vmatpush1.msra.mxu0 %v67
    %298 = vmatprep.subr.mxu0 0.0
    %299 = vmatpush1.msra.mxu0 %v68
    %300 = vmatprep.subr.mxu0 0.0
    %301 = vmatpush1.msra.mxu0 %v69
    %302 = vmatprep.subr.mxu0 0.0
    %303 = vmatpush1.msra.mxu0 %v70
    %304 = vmatprep.subr.mxu0 0.0
    %305 = vmatpush1.msra.mxu0 %v71
    %306 = vmatprep.subr.mxu0 0.0
    %307 = vmatpush1.msra.mxu0 %v72
    %308 = vmatprep.subr.mxu0 0.0
    %309 = vmatpush1.msra.mxu0 %v73
    %310 = vmatprep.subr.mxu0 0.0
    %311 = vmatpush1.msra.mxu0 %v74
    %312 = vmatprep.subr.mxu0 0.0
    %313 = vmatpush1.msra.mxu0 %v75
    %314 = vmatprep.subr.mxu0 0.0
    %315 = vmatpush1.msra.mxu0 %v76
    %316 = vmatprep.subr.mxu0 0.0
    %317 = vmatpush1.msra.mxu0 %v77
    %318 = vmatprep.subr.mxu0 0.0
    %319 = vmatpush1.msra.mxu0 %v78
    %320 = vmatprep.subr.mxu0 0.0
    %321 = vmatpush1.msra.mxu0 %v79
    %322 = vmatprep.subr.mxu0 0.0
    %323 = vmatpush1.msra.mxu0 %v80
    %324 = vmatprep.subr.mxu0 0.0
    %325 = vmatpush1.msra.mxu0 %v81
    %326 = vmatprep.subr.mxu0 0.0
    %327 = vmatpush1.msra.mxu0 %v82
    %328 = vmatprep.subr.mxu0 0.0
    %329 = vmatpush1.msra.mxu0 %v83
    %330 = vmatprep.subr.mxu0 0.0
    %331 = vmatpush1.msra.mxu0 %v84
    %332 = vmatprep.subr.mxu0 0.0
    %333 = vmatpush1.msra.mxu0 %v85
    %334 = vmatprep.subr.mxu0 0.0
    %335 = vmatpush1.msra.mxu0 %v86
    %336 = vmatprep.mubr.f32.mxu0 %v176
    %337 = vmatmul.mubr.f32.gmra.mrb[0].mxu0 %v174
    %v338 = vpop.f32.mrb[0].mxu0
    %v339 = vadd.f32 %v269, %v338
    %v340 = vpop.f32.mrb[0].mxu0
    %341 = vdwg.mxu0
    %342 = vmatprep.subr.mxu0 0.0
    %343 = vmatpush1.msra.mxu0 %v87
    %344 = vmatprep.subr.mxu0 0.0
    %345 = vmatpush1.msra.mxu0 %v88
    %346 = vmatprep.subr.mxu0 0.0
    %347 = vmatpush1.msra.mxu0 %v89
    %348 = vmatprep.subr.mxu0 0.0
    %349 = vmatpush1.msra.mxu0 %v90
    %350 = vmatprep.subr.mxu0 0.0
    %351 = vmatpush1.msra.mxu0 %v91
    %352 = vmatprep.subr.mxu0 0.0
    %353 = vmatpush1.msra.mxu0 %v92
    %354 = vmatprep.subr.mxu0 0.0
    %355 = vmatpush1.msra.mxu0 %v93
    %356 = vmatprep.subr.mxu0 0.0
    %357 = vmatpush1.msra.mxu0 %v94
    %358 = vmatprep.subr.mxu0 0.0
    %359 = vmatpush1.msra.mxu0 %v95
    %360 = vmatprep.subr.mxu0 0.0
    %361 = vmatpush1.msra.mxu0 %v96
    %362 = vmatprep.subr.mxu0 0.0
    %363 = vmatpush1.msra.mxu0 %v97
    %364 = vmatprep.subr.mxu0 0.0
    %365 = vmatpush1.msra.mxu0 %v98
    %366 = vmatprep.subr.mxu0 0.0
    %367 = vmatpush1.msra.mxu0 %v99
    %368 = vmatprep.subr.mxu0 0.0
    %369 = vmatpush1.msra.mxu0 %v100
    %370 = vmatprep.subr.mxu0 0.0
    %371 = vmatpush1.msra.mxu0 %v101
    %372 = vmatprep.subr.mxu0 0.0
    %373 = vmatpush1.msra.mxu0 %v102
    %374 = vmatprep.subr.mxu0 0.0
    %375 = vmatpush1.msra.mxu0 %v103
    %376 = vmatprep.subr.mxu0 0.0
    %377 = vmatpush1.msra.mxu0 %v104
    %378 = vmatprep.subr.mxu0 0.0
    %379 = vmatpush1.msra.mxu0 %v105
    %380 = vmatprep.subr.mxu0 0.0
    %381 = vmatpush1.msra.mxu0 %v106
    %382 = vmatprep.subr.mxu0 0.0
    %383 = vmatpush1.msra.mxu0 %v107
    %384 = vmatprep.subr.mxu0 0.0
    %385 = vmatpush1.msra.mxu0 %v108
    %386 = vmatprep.subr.mxu0 0.0
    %387 = vmatpush1.msra.mxu0 %v109
    %388 = vmatprep.subr.mxu0 0.0
    %389 = vmatpush1.msra.mxu0 %v110
    %390 = vmatprep.subr.mxu0 0.0
    %391 = vmatpush1.msra.mxu0 %v111
    %392 = vmatprep.subr.mxu0 0.0
    %393 = vmatpush1.msra.mxu0 %v112
    %394 = vmatprep.subr.mxu0 0.0
    %395 = vmatpush1.msra.mxu0 %v113
    %396 = vmatprep.subr.mxu0 0.0
    %397 = vmatpush1.msra.mxu0 %v114
    %398 = vmatprep.subr.mxu0 0.0
    %399 = vmatpush1.msra.mxu0 %v115
    %400 = vmatprep.subr.mxu0 0.0
    %401 = vmatpush1.msra.mxu0 %v116
    %402 = vmatprep.subr.mxu0 0.0
    %403 = vmatpush1.msra.mxu0 %v117
    %404 = vmatprep.subr.mxu0 0.0
    %405 = vmatpush1.msra.mxu0 %v118
    %406 = vmatprep.mubr.f32.mxu0 %v192
    %407 = vmatmul.mubr.f32.gmra.mrb[0].mxu0 %v184
    %v408 = vpop.f32.mrb[0].mxu0
    %v409 = vadd.f32 %v339, %v408
    %v410 = vpop.f32.mrb[0].mxu0
    %411 = vdwg.mxu0
    %412 = vmatprep.subr.mxu0 0.0
    %413 = vmatpush1.msra.mxu0 %v119
    %414 = vmatprep.subr.mxu0 0.0
    %415 = vmatpush1.msra.mxu0 %v120
    %416 = vmatprep.subr.mxu0 0.0
    %417 = vmatpush1.msra.mxu0 %v121
    %418 = vmatprep.subr.mxu0 0.0
    %419 = vmatpush1.msra.mxu0 %v122
    %420 = vmatprep.subr.mxu0 0.0
    %421 = vmatpush1.msra.mxu0 %v123
    %422 = vmatprep.subr.mxu0 0.0
    %423 = vmatpush1.msra.mxu0 %v124
    %424 = vmatprep.subr.mxu0 0.0
    %425 = vmatpush1.msra.mxu0 %v125
    %426 = vmatprep.subr.mxu0 0.0
    %427 = vmatpush1.msra.mxu0 %v126
    %428 = vmatprep.subr.mxu0 0.0
    %429 = vmatpush1.msra.mxu0 %v127
    %430 = vmatprep.subr.mxu0 0.0
    %431 = vmatpush1.msra.mxu0 %v128
    %432 = vmatprep.subr.mxu0 0.0
    %433 = vmatpush1.msra.mxu0 %v129
    %434 = vmatprep.subr.mxu0 0.0
    %435 = vmatpush1.msra.mxu0 %v130
    %436 = vmatprep.subr.mxu0 0.0
    %437 = vmatpush1.msra.mxu0 %v131
    %438 = vmatprep.subr.mxu0 0.0
    %439 = vmatpush1.msra.mxu0 %v132
    %440 = vmatprep.subr.mxu0 0.0
    %441 = vmatpush1.msra.mxu0 %v133
    %442 = vmatprep.subr.mxu0 0.0
    %443 = vmatpush1.msra.mxu0 %v134
    %444 = vmatprep.subr.mxu0 0.0
    %445 = vmatpush1.msra.mxu0 %v135
    %446 = vmatprep.subr.mxu0 0.0
    %447 = vmatpush1.msra.mxu0 %v136
    %448 = vmatprep.subr.mxu0 0.0
    %449 = vmatpush1.msra.mxu0 %v137
    %450 = vmatprep.subr.mxu0 0.0
    %451 = vmatpush1.msra.mxu0 %v138
    %452 = vmatprep.subr.mxu0 0.0
    %453 = vmatpush1.msra.mxu0 %v139
    %454 = vmatprep.subr.mxu0 0.0
    %455 = vmatpush1.msra.mxu0 %v140
    %456 = vmatprep.subr.mxu0 0.0
    %457 = vmatpush1.msra.mxu0 %v141
    %458 = vmatprep.subr.mxu0 0.0
    %459 = vmatpush1.msra.mxu0 %v142
    %460 = vmatprep.subr.mxu0 0.0
    %461 = vmatpush1.msra.mxu0 %v143
    %462 = vmatprep.subr.mxu0 0.0
    %463 = vmatpush1.msra.mxu0 %v144
    %464 = vmatprep.subr.mxu0 0.0
    %465 = vmatpush1.msra.mxu0 %v145
    %466 = vmatprep.subr.mxu0 0.0
    %467 = vmatpush1.msra.mxu0 %v146
    %468 = vmatprep.subr.mxu0 0.0
    %469 = vmatpush1.msra.mxu0 %v147
    %470 = vmatprep.subr.mxu0 0.0
    %471 = vmatpush1.msra.mxu0 %v148
    %472 = vmatprep.subr.mxu0 0.0
    %473 = vmatpush1.msra.mxu0 %v149
    %474 = vmatprep.subr.mxu0 0.0
    %475 = vmatpush1.msra.mxu0 %v150
    %476 = vmatprep.mubr.f32.mxu0 %v193
    %477 = vmatmul.mubr.f32.gmra.mrb[0].mxu0 %v191
    %v478 = vpop.f32.mrb[0].mxu0
    %v479 = vadd.f32 %v409, %v478
    %v480 = vpop.f32.mrb[0].mxu0
    %481 = vdwg.mxu0
    %vm482 = vcmask 123904
    %v483 = vsel %vm482, %v479, -inf
    %484 = vmax.xlane.f32.xlu0 %v483
    %v485 = vpop.xlane.xlu0 %484
    %vm486 = vcmask 255104
    %v487 = vsel %vm486, %v479, -inf
    %488 = vmax.xlane.f32.xlu0 %v487
    %v489 = vpop.xlane.xlu0 %488
    %vm490 = vcmask 386304
    %v491 = vsel %vm490, %v479, -inf
    %492 = vmax.xlane.f32.xlu0 %v491
    %v493 = vpop.xlane.xlu0 %492
    %vm494 = vcmask 517504
    %v495 = vsel %vm494, %v479, -inf
    %496 = vmax.xlane.f32.xlu0 %v495
    %v497 = vpop.xlane.xlu0 %496
    %vm498 = vcmask 7168
    %v499 = vsel %vm498, %v485, %v489
    %vm500 = vcmask 15360
    %v501 = vsel %vm500, %v499, %v493
    %vm502 = vcmask 23552
    %v503 = vsel %vm502, %v501, %v497
    %v504 = vld [vmem:[%s3] sm:$0xf]
    %vm505 = vcmask 31744
    %v507 = vsel %vm505, %v503, 0
    %vm509 = vcmask 1043456
    %v511 = vsel %vm509, %v504, 0
    %513 = vmatprep.subr.mxu0 0.0
    %514 = vmatpush1.msra.mxu0 %v511
    %515 = vmatprep.subr.mxu0 0.0
    %516 = vmatpush1.msra.mxu0 0.0
    %517 = vmatprep.subr.mxu0 0.0
    %518 = vmatpush1.msra.mxu0 0.0
    %519 = vmatprep.subr.mxu0 0.0
    %520 = vmatpush1.msra.mxu0 0.0
    %521 = vmatprep.subr.mxu0 0.0
    %522 = vmatpush1.msra.mxu0 0.0
    %523 = vmatprep.subr.mxu0 0.0
    %524 = vmatpush1.msra.mxu0 0.0
    %525 = vmatprep.subr.mxu0 0.0
    %526 = vmatpush1.msra.mxu0 0.0
    %527 = vmatprep.subr.mxu0 0.0
    %528 = vmatpush1.msra.mxu0 0.0
    %529 = vmatprep.subr.mxu0 0.0
    %530 = vmatpush1.msra.mxu0 0.0
    %531 = vmatprep.subr.mxu0 0.0
    %532 = vmatpush1.msra.mxu0 0.0
    %533 = vmatprep.subr.mxu0 0.0
    %534 = vmatpush1.msra.mxu0 0.0
    %535 = vmatprep.subr.mxu0 0.0
    %536 = vmatpush1.msra.mxu0 0.0
    %537 = vmatprep.subr.mxu0 0.0
    %538 = vmatpush1.msra.mxu0 0.0
    %539 = vmatprep.subr.mxu0 0.0
    %540 = vmatpush1.msra.mxu0 0.0
    %541 = vmatprep.subr.mxu0 0.0
    %542 = vmatpush1.msra.mxu0 0.0
    %543 = vmatprep.subr.mxu0 0.0
    %544 = vmatpush1.msra.mxu0 0.0
    %545 = vmatprep.subr.mxu0 0.0
    %546 = vmatpush1.msra.mxu0 0.0
    %547 = vmatprep.subr.mxu0 0.0
    %548 = vmatpush1.msra.mxu0 0.0
    %549 = vmatprep.subr.mxu0 0.0
    %550 = vmatpush1.msra.mxu0 0.0
    %551 = vmatprep.subr.mxu0 0.0
    %552 = vmatpush1.msra.mxu0 0.0
    %553 = vmatprep.subr.mxu0 0.0
    %554 = vmatpush1.msra.mxu0 0.0
    %555 = vmatprep.subr.mxu0 0.0
    %556 = vmatpush1.msra.mxu0 0.0
    %557 = vmatprep.subr.mxu0 0.0
    %558 = vmatpush1.msra.mxu0 0.0
    %559 = vmatprep.subr.mxu0 0.0
    %560 = vmatpush1.msra.mxu0 0.0
    %561 = vmatprep.subr.mxu0 0.0
    %562 = vmatpush1.msra.mxu0 0.0
    %563 = vmatprep.subr.mxu0 0.0
    %564 = vmatpush1.msra.mxu0 0.0
    %565 = vmatprep.subr.mxu0 0.0
    %566 = vmatpush1.msra.mxu0 0.0
    %567 = vmatprep.subr.mxu0 0.0
    %568 = vmatpush1.msra.mxu0 0.0
    %569 = vmatprep.subr.mxu0 0.0
    %570 = vmatpush1.msra.mxu0 0.0
    %571 = vmatprep.subr.mxu0 0.0
    %572 = vmatpush1.msra.mxu0 0.0
    %573 = vmatprep.subr.mxu0 0.0
    %574 = vmatpush1.msra.mxu0 0.0
    %575 = vmatprep.subr.mxu0 0.0
    %576 = vmatpush1.msra.mxu0 0.0
    %577 = vmatprep.mubr.f32.mxu0 0.0
    %578 = vmatmul.mubr.f32.gmra.mrb[0].mxu0 %v507
    %v579 = vpop.f32.mrb[0].mxu0
    %v580 = vadd.f32 0.0, %v579
    %v581 = vpop.f32.mrb[0].mxu0
    %582 = vdwg.mxu0
    %v583 = vsub.f32 %v479, %v580
    %v584 = vmul.f32 %v583, 1.442695
    %v585 = vpow.pop %v584
    %v586 = vld [vmem:[%s4] sm:$0xff]
    %v587 = vld [vmem:[%s4 + $0x8] sm:$0xff]
    %v588 = vld [vmem:[%s4 + $0x10] sm:$0xff]
    %v589 = vld [vmem:[%s4 + $0x18] sm:$0xff]
    %v590 = vld [vmem:[%s4 + $0x20] sm:$0xff]
    %v591 = vld [vmem:[%s4 + $0x28] sm:$0xff]
    %v592 = vld [vmem:[%s4 + $0x30] sm:$0xff]
    %v593 = vld [vmem:[%s4 + $0x38] sm:$0xff]
    %vm594 = vcmask 523264
    %v596 = vsel %vm594, %v585, 0
    %598 = vmatprep.subr.mxu0 0.0
    %599 = vmatpush1.msra.mxu0 %v586
    %600 = vmatprep.subr.mxu0 0.0
    %601 = vmatpush1.msra.mxu0 %v587
    %602 = vmatprep.subr.mxu0 0.0
    %603 = vmatpush1.msra.mxu0 %v588
    %604 = vmatprep.subr.mxu0 0.0
    %605 = vmatpush1.msra.mxu0 %v589
    %606 = vmatprep.subr.mxu0 0.0
    %607 = vmatpush1.msra.mxu0 %v590
    %608 = vmatprep.subr.mxu0 0.0
    %609 = vmatpush1.msra.mxu0 %v591
    %610 = vmatprep.subr.mxu0 0.0
    %611 = vmatpush1.msra.mxu0 %v592
    %612 = vmatprep.subr.mxu0 0.0
    %613 = vmatpush1.msra.mxu0 %v593
    %614 = vmatprep.subr.mxu0 0.0
    %615 = vmatpush1.msra.mxu0 0.0
    %616 = vmatprep.subr.mxu0 0.0
    %617 = vmatpush1.msra.mxu0 0.0
    %618 = vmatprep.subr.mxu0 0.0
    %619 = vmatpush1.msra.mxu0 0.0
    %620 = vmatprep.subr.mxu0 0.0
    %621 = vmatpush1.msra.mxu0 0.0
    %622 = vmatprep.subr.mxu0 0.0
    %623 = vmatpush1.msra.mxu0 0.0
    %624 = vmatprep.subr.mxu0 0.0
    %625 = vmatpush1.msra.mxu0 0.0
    %626 = vmatprep.subr.mxu0 0.0
    %627 = vmatpush1.msra.mxu0 0.0
    %628 = vmatprep.subr.mxu0 0.0
    %629 = vmatpush1.msra.mxu0 0.0
    %630 = vmatprep.subr.mxu0 0.0
    %631 = vmatpush1.msra.mxu0 0.0
    %632 = vmatprep.subr.mxu0 0.0
    %633 = vmatpush1.msra.mxu0 0.0
    %634 = vmatprep.subr.mxu0 0.0
    %635 = vmatpush1.msra.mxu0 0.0
    %636 = vmatprep.subr.mxu0 0.0
    %637 = vmatpush1.msra.mxu0 0.0
    %638 = vmatprep.subr.mxu0 0.0
    %639 = vmatpush1.msra.mxu0 0.0
    %640 = vmatprep.subr.mxu0 0.0
    %641 = vmatpush1.msra.mxu0 0.0
    %642 = vmatprep.subr.mxu0 0.0
    %643 = vmatpush1.msra.mxu0 0.0
    %644 = vmatprep.subr.mxu0 0.0
    %645 = vmatpush1.msra.mxu0 0.0
    %646 = vmatprep.subr.mxu0 0.0
    %647 = vmatpush1.msra.mxu0 0.0
    %648 = vmatprep.subr.mxu0 0.0
    %649 = vmatpush1.msra.mxu0 0.0
    %650 = vmatprep.subr.mxu0 0.0
    %651 = vmatpush1.msra.mxu0 0.0
    %652 = vmatprep.subr.mxu0 0.0
    %653 = vmatpush1.msra.mxu0 0.0
    %654 = vmatprep.subr.mxu0 0.0
    %655 = vmatpush1.msra.mxu0 0.0
    %656 = vmatprep.subr.mxu0 0.0
    %657 = vmatpush1.msra.mxu0 0.0
    %658 = vmatprep.subr.mxu0 0.0
    %659 = vmatpush1.msra.mxu0 0.0
    %660 = vmatprep.subr.mxu0 0.0
    %661 = vmatpush1.msra.mxu0 0.0
    %662 = vmatprep.mubr.f32.mxu0 0.0
    %663 = vmatmul.mubr.f32.gmra.mrb[0].mxu0 %v596
    %v664 = vpop.f32.mrb[0].mxu0
    %v665 = vadd.f32 0.0, %v664
    %v666 = vpop.f32.mrb[0].mxu0
    %667 = vdwg.mxu0
    %v668 = vrcp.pop %v665
    %v669 = vmul.f32 %v585, %v668
    %vm670 = vcmask 517120
    %671 = vst.msk [vmem:[#allocation2] sm:$0x3] %vm670, %v669
    // Predicated region
    $region22: #{tpu_custom_call.1} parent=1 // pred_check
      _
    $region23: #{tpu_custom_call.1} parent=1 // pred_check_branch
      %673 = sbr.rel (0) target = $region25
    $region24: #{tpu_custom_call.1} parent=1 // pred_region
      %s675 = ssub.s32 32, 32
      %676 = vsyncadd [#allocation3], %s675
      %s678 = sshll.u32 [#allocation2], 4
      %s679 = int_to_ptr.vmem [resolvable:$true] %s678
      %681 = dma.vmem_to_hbm [thread:$0]  %s679, 32, %s5, [#allocation3]
    $region25: #{tpu_custom_call.1} parent=1 // pred_fallthru
      _
    // Predicated region
    $region26: #{tpu_custom_call.1} parent=1 // pred_check
      _
    $region27: #{tpu_custom_call.1} parent=1 // pred_check_branch
      %683 = sbr.rel (0) target = $region29
    $region28: #{tpu_custom_call.1} parent=1 // pred_region
      %684 = dma.done [#allocation3], 32
    $region29: #{tpu_custom_call.1} parent=1 // pred_fallthru
      _
    %685 = vsyncpa [#allocation3], 1

</llo_original>
